<compile_context>
chip_gen: v7x
topology: tpu7x:2x2x1
jax: 0.10.0
libtpu: 0.0.40
codegen_flags: <defaults>
</compile_context>

<pallas_src>
import math
import functools

import jax
import jax.numpy as jnp
from jax.experimental import pallas as pl
from jax.experimental.pallas import tpu as pltpu


# ----------------------------------------------------------------------------
# Fused layer kernel.
#   out[l*C2+o, m] = sum_c P1[l,o,c] A[l,c,m]
#                  + 0.1 * sum_c P2[l,o,c] mean_u A[l,c,(b,k,:)]
#                  + 0.1 * sum_c P3[l,o,c] mean_k A[l,c,(b,:,u)]
#   optionally followed by ReLU and BatchNorm3d (train-mode stats) per o.
# ----------------------------------------------------------------------------
def _layer_kernel(a_ref, ru_ref, bu_ref, rk_ref, bk_ref, w_ref, out_ref, *,
                  L, C_out2, apply_relu, apply_bn, bn_eps):
    # a_ref : (L*C_in, M)          lane-dense, m = (b*K + k)*U + u
    # ru_ref: (M, B*K) * (1/U)     pool-over-U operator (factored)
    # bu_ref: (B*K, M)             broadcast-back indicator
    # rk_ref: (M, B*U) * (1/K)     pool-over-K operator (factored)
    # bk_ref: (B*U, M)             broadcast-back indicator
    # w_ref : (L*C_out2, 3*L*C_in) fused block-diag [P1 | 0.1*P2 | 0.1*P3]
    # out_ref: (L*C_out2, M)
    a = a_ref[...]
    M = a.shape[-1]

    # Pool-then-broadcast on the C_in-row side (reassociated aggregation).
    pool_u = jnp.dot(a, ru_ref[...], preferred_element_type=jnp.float32)
    pool_k = jnp.dot(a, rk_ref[...], preferred_element_type=jnp.float32)
    mean_u = jnp.dot(pool_u, bu_ref[...], preferred_element_type=jnp.float32)
    mean_k = jnp.dot(pool_k, bk_ref[...], preferred_element_type=jnp.float32)

    cat = jnp.concatenate([a, mean_u, mean_k], axis=0)     # (3*L*C_in, M)
    y = jnp.dot(w_ref[...], cat, preferred_element_type=jnp.float32)
    if apply_relu:
        y = jnp.maximum(y, 0.0)
    out_ref[...] = y

    if apply_bn:
        # Exact two-pass per-channel statistics over all (L, M) positions,
        # re-reading out_ref so only one (C_out2, M) tile is live at a time.
        n = float(L * M)
        s = jnp.zeros((C_out2, 1), jnp.float32)
        for l in range(L):
            s = s + out_ref[pl.ds(l * C_out2, C_out2), :].sum(
                axis=-1, keepdims=True)
        mu = s / n
        v = jnp.zeros((C_out2, 1), jnp.float32)
        for l in range(L):
            d = out_ref[pl.ds(l * C_out2, C_out2), :] - mu
            v = v + (d * d).sum(axis=-1, keepdims=True)
        inv = jax.lax.rsqrt(v / n + bn_eps)
        for l in range(L):
            out_ref[pl.ds(l * C_out2, C_out2), :] = (
                out_ref[pl.ds(l * C_out2, C_out2), :] - mu) * inv


def _blockdiag(P):
    """(L, C2, C) -> block-diagonal (L*C2, L*C)."""
    L, C2, C = P.shape
    eye = jnp.eye(L, dtype=P.dtype)
    return jnp.einsum('loc,lm->lomc', P, eye).reshape(L * C2, L * C)


def make_pool_mats(B, K, U):
    """Factored pooling operators for the flat index m = (b*K + k)*U + u.
    ru: (M, B*K) with 1/U entries -> pool (mean) over U.
    bu: (B*K, M) indicator        -> broadcast back.
    rk: (M, B*U) with 1/K entries -> pool (mean) over K.
    bk: (B*U, M) indicator        -> broadcast back."""
    M = B * K * U
    m = jnp.arange(M)
    gu = m // U                       # group id for U-mean: (b, k)
    b = m // (K * U)
    u = m % U
    gk = b * U + u                    # group id for K-mean: (b, u)
    GU, GK = B * K, B * U
    ru = (gu[:, None] == jnp.arange(GU)[None, :]).astype(jnp.float32) / float(U)
    bu = (jnp.arange(GU)[:, None] == gu[None, :]).astype(jnp.float32)
    rk = (gk[:, None] == jnp.arange(GK)[None, :]).astype(jnp.float32) / float(K)
    bk = (jnp.arange(GK)[:, None] == gk[None, :]).astype(jnp.float32)
    return ru, bu, rk, bk


def layer_combine(A_lcm, P1, P2, P3, ru, bu, rk, bk, apply_relu, apply_bn,
                  bn_eps=1e-5):
    L, C_in, M = A_lcm.shape
    C_out2 = P1.shape[1]
    LC, LC2 = L * C_in, L * C_out2
    GU, GK = ru.shape[1], rk.shape[1]

    a_flat = A_lcm.reshape(LC, M)
    W = jnp.concatenate(
        [_blockdiag(P1), 0.1 * _blockdiag(P2), 0.1 * _blockdiag(P3)], axis=1)

    # Explicit VMEM budget sized from the (double-buffered) block footprint.
    elems = (LC * M + M * GU + GU * M + M * GK + GK * M
             + LC2 * 3 * LC + LC2 * M)
    vmem_bytes = int(min(max(2 * 4 * elems + (4 << 20), 4 << 20), 32 << 20))

    kernel = functools.partial(_layer_kernel, L=L, C_out2=C_out2,
                               apply_relu=apply_relu, apply_bn=apply_bn,
                               bn_eps=bn_eps)
    out = pl.pallas_call(
        kernel,
        out_shape=jax.ShapeDtypeStruct((LC2, M), jnp.float32),
        grid=(1,),
        in_specs=[
            pl.BlockSpec((LC, M), lambda i: (0, 0)),
            pl.BlockSpec((M, GU), lambda i: (0, 0)),
            pl.BlockSpec((GU, M), lambda i: (0, 0)),
            pl.BlockSpec((M, GK), lambda i: (0, 0)),
            pl.BlockSpec((GK, M), lambda i: (0, 0)),
            pl.BlockSpec((LC2, 3 * LC), lambda i: (0, 0)),
        ],
        out_specs=pl.BlockSpec((LC2, M), lambda i: (0, 0)),
        compiler_params=pltpu.CompilerParams(
            dimension_semantics=("arbitrary",),
            vmem_limit_bytes=vmem_bytes),
    )(a_flat, ru, bu, rk, bk, W)
    return out.reshape(L, C_out2, M)


# Plain-JAX reference of the fused layer (correctness check only).
def _layer_reference(A_lcm, P1, P2, P3, B, K, U, apply_relu, apply_bn,
                     eps=1e-5):
    L, C_in, M = A_lcm.shape
    a = A_lcm.reshape(L, C_in, B, K, U)
    t1 = jnp.einsum('loc,lcbku->lobku', P1, a)
    t2 = jnp.einsum('loc,lcbk->lobk', P2, a.mean(axis=-1))
    t3 = jnp.einsum('loc,lcbu->lobu', P3, a.mean(axis=-2))
    r = t1 + 0.1 * t2[..., None] + 0.1 * t3[:, :, :, None, :]
    if apply_relu:
        r = jnp.maximum(r, 0.0)
    if apply_bn:
        mu = r.mean(axis=(0, 2, 3, 4), keepdims=True)
        var = ((r - mu) ** 2).mean(axis=(0, 2, 3, 4), keepdims=True)
        r = (r - mu) * jax.lax.rsqrt(var + eps)
    return r.reshape(L, -1, M)


# ----------------------------------------------------------------------------
# Layer_EIB_3DPE_Nested.forward equivalent (activation layout (L, C, M)).
# ----------------------------------------------------------------------------
def layer_forward(A_lcm, params, out_dim, sample_size, key, is_bn, is_transfer,
                  pool_mats, B, K, U, compute_ixz):
    P1, P2, P3 = params
    ru, bu, rk, bk = pool_mats
    A_new = layer_combine(A_lcm, P1, P2, P3, ru, bu, rk, bk,
                          apply_relu=is_transfer, apply_bn=is_bn)
    L = A_new.shape[0]

    I_XZ = None
    if compute_ixz:
        mean = A_new[:, :out_dim, :]                               # (L, D, M)
        std = jax.nn.softplus(A_new[:, out_dim:, :]) + 1e-10
        # TODO(synk): PyTorch uses torch's global-RNG Normal.rsample; here the
        # reparameterized sampling uses a deterministic jax.random key instead.
        eps = jax.random.normal(key, (sample_size,) + mean.shape, jnp.float32)
        Z = mean[None] + std[None] * eps
        log_c = 0.5 * math.log(2.0 * math.pi)
        z_logit = jnp.sum(-((Z - mean[None]) ** 2) / (2.0 * std[None] ** 2)
                          - jnp.log(std)[None] - log_c, axis=2)    # (S, L, M)
        prior_logit = jnp.sum(-(Z ** 2) / 2.0 - log_c, axis=2)     # (S, L, M)
        per_pos = jnp.mean(z_logit - prior_logit, axis=0)          # (L, M)
        I_XZ = per_pos.reshape(L, B, K * U).sum(axis=(0, 2))       # (B,)

    A_out = A_new[:, :out_dim, :]
    return A_out, I_XZ


# ----------------------------------------------------------------------------
# EIB_GNN3D_L_K_U_Nested_Power equivalent
# ----------------------------------------------------------------------------
class EIBGNN3DNestedPowerPallas:
    def __init__(self, nested_dim, input_dim, hidden_dim, output_dim,
                 sample_size, BATCH_SIZE, key):
        self.nested_dim = nested_dim
        self.sample_size = sample_size
        self.BATCH_SIZE = BATCH_SIZE
        self.dim = [input_dim] + list(hidden_dim) + [output_dim]
        self.params, self.is_bn, self.is_transfer = [], [], []
        for i in range(len(self.dim) - 1):
            in_d, out_d = self.dim[i], self.dim[i + 1]
            ini = math.sqrt(3.0 / out_d / 2.0 / in_d)
            key, k1, k2, k3 = jax.random.split(key, 4)
            shape = (nested_dim, out_d * 2, in_d)
            self.params.append((
                jax.random.uniform(k1, shape, jnp.float32, -ini, ini),
                jax.random.uniform(k2, shape, jnp.float32, -ini, ini),
                jax.random.uniform(k3, shape, jnp.float32, -ini, ini),
            ))
            last = (i == len(self.dim) - 2)
            self.is_bn.append(not last)
            self.is_transfer.append(not last)
        # Jit the whole forward once (fuses all the non-Pallas glue).
        self._jit_forward = jax.jit(self._forward, static_argnums=(1, 2, 3, 4))

    def _forward(self, Hhat, nbrOfRealizations, L, K, U, key):
        B = self.BATCH_SIZE * nbrOfRealizations
        M = B * K * U

        Hr = jnp.real(Hhat).reshape(B, 1, L, K, U)
        Hi = jnp.imag(Hhat).reshape(B, 1, L, K, U)
        A_nclku = jnp.concatenate([Hr, Hi], axis=1).astype(jnp.float32)
        # lane-dense layout (L, C, M) with m = (b*K + k)*U + u
        A = jnp.transpose(A_nclku, (2, 1, 0, 3, 4)).reshape(L, 2, M)

        pool_mats = make_pool_mats(B, K, U)

        I_XZ_layers = []
        n_layers = len(self.dim) - 1
        for i in range(n_layers):
            key, sub = jax.random.split(key)
            last = (i == n_layers - 1)
            A, I_XZ = layer_forward(A, self.params[i], self.dim[i + 1],
                                    self.sample_size, sub,
                                    self.is_bn[i], self.is_transfer[i],
                                    pool_mats, B, K, U,
                                    compute_ixz=not last)
            if not last:
                I_XZ_layers.append(I_XZ)

        out_dim = self.dim[-1]
        # back to (B, C_out, L, K, U)
        A_b = jnp.transpose(A.reshape(L, out_dim, B, K, U), (2, 1, 0, 3, 4))

        # ---- precoding direction + power normalization (plain-JAX glue) ----
        F1 = A_b[:, 0]                                    # (B, L, K, U)
        F2 = A_b[:, 1]
        # TODO(synk): no epsilon on the divisors, mirroring the PyTorch code.
        F3 = jnp.sqrt(jnp.sum(F1 ** 2, axis=3) + jnp.sum(F2 ** 2, axis=3))
        F3 = jnp.tile(F3[..., None], (1, 1, 1, U))
        Fhat = (F1 + 1j * F2) / F3                        # complex64

        P1_ = A_b[:, 2:].reshape(self.BATCH_SIZE, nbrOfRealizations, L, K, U)
        P1_ = jnp.swapaxes(P1_, 2, 3)                     # (BS, R, K, L, U)
        norm = jnp.sqrt(jnp.sum(P1_ ** 2, axis=(3, 4)))
        Phat = P1_ / norm[:, :, :, None, None] * math.sqrt(L * U)

        Fhat = Fhat.reshape(self.BATCH_SIZE, nbrOfRealizations, L, K, U) \
            * jnp.swapaxes(Phat, 2, 3)

        if I_XZ_layers:
            I_XZ_tot = jnp.sum(jnp.stack(I_XZ_layers, axis=0), axis=0)
        else:
            I_XZ_tot = jnp.zeros((B,), jnp.float32)
        return Fhat, I_XZ_tot

    def __call__(self, Hhat, nbrOfRealizations, L, K, U, key):
        return self._jit_forward(Hhat, nbrOfRealizations, L, K, U, key)


# ----------------------------------------------------------------------------
if __name__ == "__main__":
    BATCH_SIZE = 2
    nbrOfRealizations = 2
    L, K, U = 3, 4, 8
    nested_dim = L            # required: nested loop over dim 2 (== L)
    input_dim = 2             # real + imag channels
    hidden_dim = (4,)
    output_dim = 3            # 2 channels for F (re/im) + 1 channel for power
    sample_size = 2

    root = jax.random.PRNGKey(0)
    k_model, k_re, k_im, k_fwd, k_chk = jax.random.split(root, 5)

    model = EIBGNN3DNestedPowerPallas(nested_dim, input_dim, hidden_dim,
                                      output_dim, sample_size, BATCH_SIZE,
                                      k_model)

    Hr = jax.random.normal(k_re, (BATCH_SIZE, nbrOfRealizations, L, K, U),
                           jnp.float32)
    Hi = jax.random.normal(k_im, (BATCH_SIZE, nbrOfRealizations, L, K, U),
                           jnp.float32)
    Hhat = Hr + 1j * Hi

    # Quick correctness check of the fused layer kernel vs a plain-JAX ref.
    B = BATCH_SIZE * nbrOfRealizations
    M = B * K * U
    A_chk = jax.random.normal(k_chk, (L, input_dim, M), jnp.float32)
    ru, bu, rk, bk = make_pool_mats(B, K, U)
    P1c, P2c, P3c = model.params[0]
    out_k = layer_combine(A_chk, P1c, P2c, P3c, ru, bu, rk, bk,
                          apply_relu=True, apply_bn=True)
    out_r = _layer_reference(A_chk, P1c, P2c, P3c, B, K, U,
                             apply_relu=True, apply_bn=True)
    out_k, out_r = jax.block_until_ready((out_k, out_r))
    err = float(jnp.max(jnp.abs(out_k - out_r)))
    scale = 1.0 + float(jnp.max(jnp.abs(out_r)))
    assert err < 1e-2 * scale, f"layer kernel mismatch: {err}"

    Fhat_u, I_XZ_tot = model(Hhat, nbrOfRealizations, L, K, U, k_fwd)
    Fhat_u, I_XZ_tot = jax.block_until_ready((Fhat_u, I_XZ_tot))

    assert Fhat_u.shape == (BATCH_SIZE, nbrOfRealizations, L, K, U)
    assert jnp.iscomplexobj(Fhat_u)
    assert I_XZ_tot.shape == (BATCH_SIZE * nbrOfRealizations,)
    assert bool(jnp.all(jnp.isfinite(jnp.abs(Fhat_u))))
    assert bool(jnp.all(jnp.isfinite(I_XZ_tot)))
    print("KERNEL_OK")
</pallas_src>

<mosaic_0001>
module attributes {stable_mosaic.version = 11 : i64} {
  func.func @_layer_kernel(%arg0: i32, %arg1: memref<6x128xf32, #tpu.memory_space<vmem>>, %arg2: memref<128x16xf32, #tpu.memory_space<vmem>>, %arg3: memref<16x128xf32, #tpu.memory_space<vmem>>, %arg4: memref<128x32xf32, #tpu.memory_space<vmem>>, %arg5: memref<32x128xf32, #tpu.memory_space<vmem>>, %arg6: memref<24x18xf32, #tpu.memory_space<vmem>>, %arg7: memref<24x128xf32, #tpu.memory_space<vmem>>) attributes {dimension_semantics = [#tpu.dimension_semantics<arbitrary>], iteration_bounds = array<i64: 1>, scalar_prefetch = 0 : i64, scratch_operands = 0 : i64, tpu.core_type = #tpu.core_type<tc>, window_params = [{pipeline_mode = #tpu.pipeline_mode<synchronous>, transform_indices = @transform_0, window_bounds = array<i64: 6, 128>}, {pipeline_mode = #tpu.pipeline_mode<synchronous>, transform_indices = @transform_1, window_bounds = array<i64: 128, 16>}, {pipeline_mode = #tpu.pipeline_mode<synchronous>, transform_indices = @transform_2, window_bounds = array<i64: 16, 128>}, {pipeline_mode = #tpu.pipeline_mode<synchronous>, transform_indices = @transform_3, window_bounds = array<i64: 128, 32>}, {pipeline_mode = #tpu.pipeline_mode<synchronous>, transform_indices = @transform_4, window_bounds = array<i64: 32, 128>}, {pipeline_mode = #tpu.pipeline_mode<synchronous>, transform_indices = @transform_5, window_bounds = array<i64: 24, 18>}, {pipeline_mode = #tpu.pipeline_mode<synchronous>, transform_indices = @transform_6, window_bounds = array<i64: 24, 128>}]} {
    %c0 = arith.constant 0 : index
    %c0_0 = arith.constant 0 : index
    %0 = vector.load %arg1[%c0, %c0_0] : memref<6x128xf32, #tpu.memory_space<vmem>>, vector<6x128xf32>
    %c0_1 = arith.constant 0 : index
    %c0_2 = arith.constant 0 : index
    %1 = vector.load %arg2[%c0_1, %c0_2] : memref<128x16xf32, #tpu.memory_space<vmem>>, vector<128x16xf32>
    %cst = arith.constant dense<0.000000e+00> : vector<6x16xf32>
    %2 = tpu.matmul %0, %1, %cst {dimension_numbers = #tpu.dot_dimension_numbers<[1], [0], [0], [1], [0, 0, 1, 1], [], []>} : vector<6x128xf32>, vector<128x16xf32>, vector<6x16xf32> -> vector<6x16xf32>
    %c0_3 = arith.constant 0 : index
    %c0_4 = arith.constant 0 : index
    %3 = vector.load %arg4[%c0_3, %c0_4] : memref<128x32xf32, #tpu.memory_space<vmem>>, vector<128x32xf32>
    %cst_5 = arith.constant dense<0.000000e+00> : vector<6x32xf32>
    %4 = tpu.matmul %0, %3, %cst_5 {dimension_numbers = #tpu.dot_dimension_numbers<[1], [0], [0], [1], [0, 0, 1, 1], [], []>} : vector<6x128xf32>, vector<128x32xf32>, vector<6x32xf32> -> vector<6x32xf32>
    %c0_6 = arith.constant 0 : index
    %c0_7 = arith.constant 0 : index
    %5 = vector.load %arg3[%c0_6, %c0_7] : memref<16x128xf32, #tpu.memory_space<vmem>>, vector<16x128xf32>
    %cst_8 = arith.constant dense<0.000000e+00> : vector<6x128xf32>
    %6 = tpu.matmul %2, %5, %cst_8 {dimension_numbers = #tpu.dot_dimension_numbers<[1], [0], [0], [1], [0, 0, 1, 1], [], []>} : vector<6x16xf32>, vector<16x128xf32>, vector<6x128xf32> -> vector<6x128xf32>
    %c0_9 = arith.constant 0 : index
    %c0_10 = arith.constant 0 : index
    %7 = vector.load %arg5[%c0_9, %c0_10] : memref<32x128xf32, #tpu.memory_space<vmem>>, vector<32x128xf32>
    %cst_11 = arith.constant dense<0.000000e+00> : vector<6x128xf32>
    %8 = tpu.matmul %4, %7, %cst_11 {dimension_numbers = #tpu.dot_dimension_numbers<[1], [0], [0], [1], [0, 0, 1, 1], [], []>} : vector<6x32xf32>, vector<32x128xf32>, vector<6x128xf32> -> vector<6x128xf32>
    %9 = tpu.concatenate %0, %6, %8 in 0 : vector<6x128xf32>, vector<6x128xf32>, vector<6x128xf32> -> vector<18x128xf32>
    %c0_12 = arith.constant 0 : index
    %c0_13 = arith.constant 0 : index
    %10 = vector.load %arg6[%c0_12, %c0_13] : memref<24x18xf32, #tpu.memory_space<vmem>>, vector<24x18xf32>
    %cst_14 = arith.constant dense<0.000000e+00> : vector<24x128xf32>
    %11 = tpu.matmul %10, %9, %cst_14 {dimension_numbers = #tpu.dot_dimension_numbers<[1], [0], [0], [1], [0, 0, 1, 1], [], []>} : vector<24x18xf32>, vector<18x128xf32>, vector<24x128xf32> -> vector<24x128xf32>
    %cst_15 = arith.constant 0.000000e+00 : f32
    %12 = vector.broadcast %cst_15 : f32 to vector<24x128xf32>
    %13 = arith.maximumf %11, %12 : vector<24x128xf32>
    %c0_16 = arith.constant 0 : index
    %c0_17 = arith.constant 0 : index
    %14 = vector.load %arg7[%c0_16, %c0_17] : memref<24x128xf32, #tpu.memory_space<vmem>>, vector<24x128xf32>
    tpu.vector_store %arg7[%c0_16, %c0_17], %13 {strides = array<i32>} : memref<24x128xf32, #tpu.memory_space<vmem>>, vector<24x128xf32>,
    %cst_18 = arith.constant 0.000000e+00 : f32
    %15 = vector.broadcast %cst_18 : f32 to vector<8x1xf32>
    %c0_19 = arith.constant 0 : index
    %c0_20 = arith.constant 0 : index
    %16 = vector.load %arg7[%c0_19, %c0_20] : memref<24x128xf32, #tpu.memory_space<vmem>>, vector<8x128xf32>
    %cst_21 = arith.constant dense<0.000000e+00> : vector<8xf32>
    %17 = vector.multi_reduction <add>, %16, %cst_21 [1] : vector<8x128xf32> to vector<8xf32>
    %18 = vector.shape_cast %17 : vector<8xf32> to vector<8x1xf32>
    %19 = arith.addf %15, %18 : vector<8x1xf32>
    %c8 = arith.constant 8 : index
    %c0_22 = arith.constant 0 : index
    %20 = vector.load %arg7[%c8, %c0_22] : memref<24x128xf32, #tpu.memory_space<vmem>>, vector<8x128xf32>
    %cst_23 = arith.constant dense<0.000000e+00> : vector<8xf32>
    %21 = vector.multi_reduction <add>, %20, %cst_23 [1] : vector<8x128xf32> to vector<8xf32>
    %22 = vector.shape_cast %21 : vector<8xf32> to vector<8x1xf32>
    %23 = arith.addf %19, %22 : vector<8x1xf32>
    %c16 = arith.constant 16 : index
    %c0_24 = arith.constant 0 : index
    %24 = vector.load %arg7[%c16, %c0_24] : memref<24x128xf32, #tpu.memory_space<vmem>>, vector<8x128xf32>
    %cst_25 = arith.constant dense<0.000000e+00> : vector<8xf32>
    %25 = vector.multi_reduction <add>, %24, %cst_25 [1] : vector<8x128xf32> to vector<8xf32>
    %26 = vector.shape_cast %25 : vector<8xf32> to vector<8x1xf32>
    %27 = arith.addf %23, %26 : vector<8x1xf32>
    %cst_26 = arith.constant 3.840000e+02 : f32
    %28 = vector.broadcast %cst_26 : f32 to vector<8x1xf32>
    %29 = arith.divf %27, %28 : vector<8x1xf32>
    %cst_27 = arith.constant 0.000000e+00 : f32
    %30 = vector.broadcast %cst_27 : f32 to vector<8x1xf32>
    %c0_28 = arith.constant 0 : index
    %c0_29 = arith.constant 0 : index
    %31 = vector.load %arg7[%c0_28, %c0_29] : memref<24x128xf32, #tpu.memory_space<vmem>>, vector<8x128xf32>
    %32 = vector.broadcast %29 : vector<8x1xf32> to vector<8x128xf32>
    %33 = arith.subf %31, %32 : vector<8x128xf32>
    %34 = arith.mulf %33, %33 : vector<8x128xf32>
    %cst_30 = arith.constant dense<0.000000e+00> : vector<8xf32>
    %35 = vector.multi_reduction <add>, %34, %cst_30 [1] : vector<8x128xf32> to vector<8xf32>
    %36 = vector.shape_cast %35 : vector<8xf32> to vector<8x1xf32>
    %37 = arith.addf %30, %36 : vector<8x1xf32>
    %c8_31 = arith.constant 8 : index
    %c0_32 = arith.constant 0 : index
    %38 = vector.load %arg7[%c8_31, %c0_32] : memref<24x128xf32, #tpu.memory_space<vmem>>, vector<8x128xf32>
    %39 = vector.broadcast %29 : vector<8x1xf32> to vector<8x128xf32>
    %40 = arith.subf %38, %39 : vector<8x128xf32>
    %41 = arith.mulf %40, %40 : vector<8x128xf32>
    %cst_33 = arith.constant dense<0.000000e+00> : vector<8xf32>
    %42 = vector.multi_reduction <add>, %41, %cst_33 [1] : vector<8x128xf32> to vector<8xf32>
    %43 = vector.shape_cast %42 : vector<8xf32> to vector<8x1xf32>
    %44 = arith.addf %37, %43 : vector<8x1xf32>
    %c16_34 = arith.constant 16 : index
    %c0_35 = arith.constant 0 : index
    %45 = vector.load %arg7[%c16_34, %c0_35] : memref<24x128xf32, #tpu.memory_space<vmem>>, vector<8x128xf32>
    %46 = vector.broadcast %29 : vector<8x1xf32> to vector<8x128xf32>
    %47 = arith.subf %45, %46 : vector<8x128xf32>
    %48 = arith.mulf %47, %47 : vector<8x128xf32>
    %cst_36 = arith.constant dense<0.000000e+00> : vector<8xf32>
    %49 = vector.multi_reduction <add>, %48, %cst_36 [1] : vector<8x128xf32> to vector<8xf32>
    %50 = vector.shape_cast %49 : vector<8xf32> to vector<8x1xf32>
    %51 = arith.addf %44, %50 : vector<8x1xf32>
    %cst_37 = arith.constant 3.840000e+02 : f32
    %52 = vector.broadcast %cst_37 : f32 to vector<8x1xf32>
    %53 = arith.divf %51, %52 : vector<8x1xf32>
    %cst_38 = arith.constant 9.99999974E-6 : f32
    %54 = vector.broadcast %cst_38 : f32 to vector<8x1xf32>
    %55 = arith.addf %53, %54 : vector<8x1xf32>
    %56 = math.rsqrt %55 : vector<8x1xf32>
    %c0_39 = arith.constant 0 : index
    %c0_40 = arith.constant 0 : index
    %57 = vector.load %arg7[%c0_39, %c0_40] : memref<24x128xf32, #tpu.memory_space<vmem>>, vector<8x128xf32>
    %58 = vector.broadcast %29 : vector<8x1xf32> to vector<8x128xf32>
    %59 = arith.subf %57, %58 : vector<8x128xf32>
    %60 = vector.broadcast %56 : vector<8x1xf32> to vector<8x128xf32>
    %61 = arith.mulf %59, %60 : vector<8x128xf32>
    %c0_41 = arith.constant 0 : index
    %c0_42 = arith.constant 0 : index
    %62 = vector.load %arg7[%c0_41, %c0_42] : memref<24x128xf32, #tpu.memory_space<vmem>>, vector<8x128xf32>
    tpu.vector_store %arg7[%c0_41, %c0_42], %61 {strides = array<i32>} : memref<24x128xf32, #tpu.memory_space<vmem>>, vector<8x128xf32>,
    %c8_43 = arith.constant 8 : index
    %c0_44 = arith.constant 0 : index
    %63 = vector.load %arg7[%c8_43, %c0_44] : memref<24x128xf32, #tpu.memory_space<vmem>>, vector<8x128xf32>
    %64 = vector.broadcast %29 : vector<8x1xf32> to vector<8x128xf32>
    %65 = arith.subf %63, %64 : vector<8x128xf32>
    %66 = vector.broadcast %56 : vector<8x1xf32> to vector<8x128xf32>
    %67 = arith.mulf %65, %66 : vector<8x128xf32>
    %c8_45 = arith.constant 8 : index
    %c0_46 = arith.constant 0 : index
    %68 = vector.load %arg7[%c8_45, %c0_46] : memref<24x128xf32, #tpu.memory_space<vmem>>, vector<8x128xf32>
    tpu.vector_store %arg7[%c8_45, %c0_46], %67 {strides = array<i32>} : memref<24x128xf32, #tpu.memory_space<vmem>>, vector<8x128xf32>,
    %c16_47 = arith.constant 16 : index
    %c0_48 = arith.constant 0 : index
    %69 = vector.load %arg7[%c16_47, %c0_48] : memref<24x128xf32, #tpu.memory_space<vmem>>, vector<8x128xf32>
    %70 = vector.broadcast %29 : vector<8x1xf32> to vector<8x128xf32>
    %71 = arith.subf %69, %70 : vector<8x128xf32>
    %72 = vector.broadcast %56 : vector<8x1xf32> to vector<8x128xf32>
    %73 = arith.mulf %71, %72 : vector<8x128xf32>
    %c16_49 = arith.constant 16 : index
    %c0_50 = arith.constant 0 : index
    %74 = vector.load %arg7[%c16_49, %c0_50] : memref<24x128xf32, #tpu.memory_space<vmem>>, vector<8x128xf32>
    tpu.vector_store %arg7[%c16_49, %c0_50], %73 {strides = array<i32>} : memref<24x128xf32, #tpu.memory_space<vmem>>, vector<8x128xf32>,
    return
  }
  func.func @transform_0(%arg0: i32) -> (i32, i32) {
    %c0_i32 = arith.constant 0 : i32
    %c0_i32_0 = arith.constant 0 : i32
    %c0_i32_1 = arith.constant 0 : i32
    return %c0_i32, %c0_i32_0 : i32, i32
  }
  func.func @transform_1(%arg0: i32) -> (i32, i32) {
    %c0_i32 = arith.constant 0 : i32
    %c0_i32_0 = arith.constant 0 : i32
    %c0_i32_1 = arith.constant 0 : i32
    return %c0_i32, %c0_i32_0 : i32, i32
  }
  func.func @transform_2(%arg0: i32) -> (i32, i32) {
    %c0_i32 = arith.constant 0 : i32
    %c0_i32_0 = arith.constant 0 : i32
    %c0_i32_1 = arith.constant 0 : i32
    return %c0_i32, %c0_i32_0 : i32, i32
  }
  func.func @transform_3(%arg0: i32) -> (i32, i32) {
    %c0_i32 = arith.constant 0 : i32
    %c0_i32_0 = arith.constant 0 : i32
    %c0_i32_1 = arith.constant 0 : i32
    return %c0_i32, %c0_i32_0 : i32, i32
  }
  func.func @transform_4(%arg0: i32) -> (i32, i32) {
    %c0_i32 = arith.constant 0 : i32
    %c0_i32_0 = arith.constant 0 : i32
    %c0_i32_1 = arith.constant 0 : i32
    return %c0_i32, %c0_i32_0 : i32, i32
  }
  func.func @transform_5(%arg0: i32) -> (i32, i32) {
    %c0_i32 = arith.constant 0 : i32
    %c0_i32_0 = arith.constant 0 : i32
    %c0_i32_1 = arith.constant 0 : i32
    return %c0_i32, %c0_i32_0 : i32, i32
  }
  func.func @transform_6(%arg0: i32) -> (i32, i32) {
    %c0_i32 = arith.constant 0 : i32
    %c0_i32_0 = arith.constant 0 : i32
    %c0_i32_1 = arith.constant 0 : i32
    return %c0_i32, %c0_i32_0 : i32, i32
  }
}

</mosaic_0001>

<llo_original>
// kernel: tpu_custom_call.1
$region0: #{tpu_custom_call.1}
  #allocation0 [shape = 'u32[]', space=smem, size = 0x4, offset = 0x4, fixed_abs, tag = 'smem constant byte address 0x4 - core index']
  #allocation1 [shape = 'u32[144,128]{1,0:T(1,128)}', space=vmem, size = 0x12000, scoped, tag = 'internal scratch']
  %s0 = inlined_call_operand.vmem [shape: f32[6,128], index: 0, kind: input, shape index: {}]
  %s1 = inlined_call_operand.vmem [shape: f32[128,16], index: 1, kind: input, shape index: {}]
  %s2 = inlined_call_operand.vmem [shape: f32[16,128], index: 2, kind: input, shape index: {}]
  %s3 = inlined_call_operand.vmem [shape: f32[128,32], index: 3, kind: input, shape index: {}]
  %s4 = inlined_call_operand.vmem [shape: f32[32,128], index: 4, kind: input, shape index: {}]
  %s5 = inlined_call_operand.vmem [shape: f32[24,18], index: 5, kind: input, shape index: {}]
  %s6 = inlined_call_operand.hbm [shape: f32[24,128], index: 6, kind: output, shape index: {}]
  %s7 = sld [smem:[#allocation0]]
  $region34: #{tpu_custom_call.1} parent=0
    _
  %s9 = ssub.s32 1, %s7
  %s10 = scalar_select 0, %s9, %s7
  $region1: #{tpu_custom_call.1} parent=0
    #allocation2 [shape = 'u8[12288]{0}', space=vmem, size = 0x3000, scoped, tag = 'output window, operand 0, single buffered']
    #allocation3 [shape = 's32[1]{0}', space=sflag, size = 0x4, scoped, tag = 'scoped memory for tpu_custom_call.1']
    %11 = vsyncpa [#allocation3], 0
    // Predicated region
    $region2: #{tpu_custom_call.1} parent=1 // pred_check
      _
    $region3: #{tpu_custom_call.1} parent=1 // pred_check_branch
      %13 = sbr.rel (0) target = $region5
    $region4: #{tpu_custom_call.1} parent=1 // pred_region
      _
    $region5: #{tpu_custom_call.1} parent=1 // pred_fallthru
      _
    // Predicated region
    $region6: #{tpu_custom_call.1} parent=1 // pred_check
      _
    $region7: #{tpu_custom_call.1} parent=1 // pred_check_branch
      %15 = sbr.rel (0) target = $region9
    $region8: #{tpu_custom_call.1} parent=1 // pred_region
      _
    $region9: #{tpu_custom_call.1} parent=1 // pred_fallthru
      _
    // Predicated region
    $region10: #{tpu_custom_call.1} parent=1 // pred_check
      _
    $region11: #{tpu_custom_call.1} parent=1 // pred_check_branch
      %17 = sbr.rel (0) target = $region13
    $region12: #{tpu_custom_call.1} parent=1 // pred_region
      _
    $region13: #{tpu_custom_call.1} parent=1 // pred_fallthru
      _
    // Predicated region
    $region14: #{tpu_custom_call.1} parent=1 // pred_check
      _
    $region15: #{tpu_custom_call.1} parent=1 // pred_check_branch
      %19 = sbr.rel (0) target = $region17
    $region16: #{tpu_custom_call.1} parent=1 // pred_region
      _
    $region17: #{tpu_custom_call.1} parent=1 // pred_fallthru
      _
    // Predicated region
    $region18: #{tpu_custom_call.1} parent=1 // pred_check
      _
    $region19: #{tpu_custom_call.1} parent=1 // pred_check_branch
      %21 = sbr.rel (0) target = $region21
    $region20: #{tpu_custom_call.1} parent=1 // pred_region
      _
    $region21: #{tpu_custom_call.1} parent=1 // pred_fallthru
      _
    // Predicated region
    $region22: #{tpu_custom_call.1} parent=1 // pred_check
      _
    $region23: #{tpu_custom_call.1} parent=1 // pred_check_branch
      %23 = sbr.rel (0) target = $region25
    $region24: #{tpu_custom_call.1} parent=1 // pred_region
      _
    $region25: #{tpu_custom_call.1} parent=1 // pred_fallthru
      _
    %v24 = vld [vmem:[%s0] sm:$0x3f]
    %v25 = vld [vmem:[%s1] sm:$0xff]
    %v26 = vld [vmem:[%s1 + $0x8] sm:$0xff]
    %v27 = vld [vmem:[%s1 + $0x10] sm:$0xff]
    %v28 = vld [vmem:[%s1 + $0x18] sm:$0xff]
    %v29 = vld [vmem:[%s1 + $0x20] sm:$0xff]
    %v30 = vld [vmem:[%s1 + $0x28] sm:$0xff]
    %v31 = vld [vmem:[%s1 + $0x30] sm:$0xff]
    %v32 = vld [vmem:[%s1 + $0x38] sm:$0xff]
    %v33 = vld [vmem:[%s1 + $0x40] sm:$0xff]
    %v34 = vld [vmem:[%s1 + $0x48] sm:$0xff]
    %v35 = vld [vmem:[%s1 + $0x50] sm:$0xff]
    %v36 = vld [vmem:[%s1 + $0x58] sm:$0xff]
    %v37 = vld [vmem:[%s1 + $0x60] sm:$0xff]
    %v38 = vld [vmem:[%s1 + $0x68] sm:$0xff]
    %v39 = vld [vmem:[%s1 + $0x70] sm:$0xff]
    %v40 = vld [vmem:[%s1 + $0x78] sm:$0xff]
    %41 = vmatprep.subr.mxu0 0.0
    %42 = vmatpush1.msra.mxu0 %v25
    %43 = vmatprep.subr.mxu0 0.0
    %44 = vmatpush1.msra.mxu0 %v26
    %45 = vmatprep.subr.mxu0 0.0
    %46 = vmatpush1.msra.mxu0 %v27
    %47 = vmatprep.subr.mxu0 0.0
    %48 = vmatpush1.msra.mxu0 %v28
    %49 = vmatprep.subr.mxu0 0.0
    %50 = vmatpush1.msra.mxu0 %v29
    %51 = vmatprep.subr.mxu0 0.0
    %52 = vmatpush1.msra.mxu0 %v30
    %53 = vmatprep.subr.mxu0 0.0
    %54 = vmatpush1.msra.mxu0 %v31
    %55 = vmatprep.subr.mxu0 0.0
    %56 = vmatpush1.msra.mxu0 %v32
    %57 = vmatprep.subr.mxu0 0.0
    %58 = vmatpush1.msra.mxu0 %v33
    %59 = vmatprep.subr.mxu0 0.0
    %60 = vmatpush1.msra.mxu0 %v34
    %61 = vmatprep.subr.mxu0 0.0
    %62 = vmatpush1.msra.mxu0 %v35
    %63 = vmatprep.subr.mxu0 0.0
    %64 = vmatpush1.msra.mxu0 %v36
    %65 = vmatprep.subr.mxu0 0.0
    %66 = vmatpush1.msra.mxu0 %v37
    %67 = vmatprep.subr.mxu0 0.0
    %68 = vmatpush1.msra.mxu0 %v38
    %69 = vmatprep.subr.mxu0 0.0
    %70 = vmatpush1.msra.mxu0 %v39
    %71 = vmatprep.subr.mxu0 0.0
    %72 = vmatpush1.msra.mxu0 %v40
    %73 = vmatprep.subr.mxu0 0.0
    %74 = vmatpush1.msra.mxu0 0.0
    %75 = vmatprep.subr.mxu0 0.0
    %76 = vmatpush1.msra.mxu0 0.0
    %77 = vmatprep.subr.mxu0 0.0
    %78 = vmatpush1.msra.mxu0 0.0
    %79 = vmatprep.subr.mxu0 0.0
    %80 = vmatpush1.msra.mxu0 0.0
    %81 = vmatprep.subr.mxu0 0.0
    %82 = vmatpush1.msra.mxu0 0.0
    %83 = vmatprep.subr.mxu0 0.0
    %84 = vmatpush1.msra.mxu0 0.0
    %85 = vmatprep.subr.mxu0 0.0
    %86 = vmatpush1.msra.mxu0 0.0
    %87 = vmatprep.subr.mxu0 0.0
    %88 = vmatpush1.msra.mxu0 0.0
    %89 = vmatprep.subr.mxu0 0.0
    %90 = vmatpush1.msra.mxu0 0.0
    %91 = vmatprep.subr.mxu0 0.0
    %92 = vmatpush1.msra.mxu0 0.0
    %93 = vmatprep.subr.mxu0 0.0
    %94 = vmatpush1.msra.mxu0 0.0
    %95 = vmatprep.subr.mxu0 0.0
    %96 = vmatpush1.msra.mxu0 0.0
    %97 = vmatprep.subr.mxu0 0.0
    %98 = vmatpush1.msra.mxu0 0.0
    %99 = vmatprep.subr.mxu0 0.0
    %100 = vmatpush1.msra.mxu0 0.0
    %101 = vmatprep.subr.mxu0 0.0
    %102 = vmatpush1.msra.mxu0 0.0
    %103 = vmatprep.subr.mxu0 0.0
    %104 = vmatpush1.msra.mxu0 0.0
    %105 = vmatprep.mubr.f32.mxu0 0.0
    %106 = vmatmul.mubr.f32.gmra.mrb[0].mxu0 %v24
    %v107 = vpop.f32.mrb[0].mxu0
    %v108 = vadd.f32 0.0, %v107
    %v109 = vpop.f32.mrb[0].mxu0
    %110 = vdwg.mxu0
    %v111 = vld [vmem:[%s3] sm:$0xff]
    %v112 = vld [vmem:[%s3 + $0x8] sm:$0xff]
    %v113 = vld [vmem:[%s3 + $0x10] sm:$0xff]
    %v114 = vld [vmem:[%s3 + $0x18] sm:$0xff]
    %v115 = vld [vmem:[%s3 + $0x20] sm:$0xff]
    %v116 = vld [vmem:[%s3 + $0x28] sm:$0xff]
    %v117 = vld [vmem:[%s3 + $0x30] sm:$0xff]
    %v118 = vld [vmem:[%s3 + $0x38] sm:$0xff]
    %v119 = vld [vmem:[%s3 + $0x40] sm:$0xff]
    %v120 = vld [vmem:[%s3 + $0x48] sm:$0xff]
    %v121 = vld [vmem:[%s3 + $0x50] sm:$0xff]
    %v122 = vld [vmem:[%s3 + $0x58] sm:$0xff]
    %v123 = vld [vmem:[%s3 + $0x60] sm:$0xff]
    %v124 = vld [vmem:[%s3 + $0x68] sm:$0xff]
    %v125 = vld [vmem:[%s3 + $0x70] sm:$0xff]
    %v126 = vld [vmem:[%s3 + $0x78] sm:$0xff]
    %127 = vmatprep.subr.mxu0 0.0
    %128 = vmatpush1.msra.mxu0 %v111
    %129 = vmatprep.subr.mxu0 0.0
    %130 = vmatpush1.msra.mxu0 %v112
    %131 = vmatprep.subr.mxu0 0.0
    %132 = vmatpush1.msra.mxu0 %v113
    %133 = vmatprep.subr.mxu0 0.0
    %134 = vmatpush1.msra.mxu0 %v114
    %135 = vmatprep.subr.mxu0 0.0
    %136 = vmatpush1.msra.mxu0 %v115
    %137 = vmatprep.subr.mxu0 0.0
    %138 = vmatpush1.msra.mxu0 %v116
    %139 = vmatprep.subr.mxu0 0.0
    %140 = vmatpush1.msra.mxu0 %v117
    %141 = vmatprep.subr.mxu0 0.0
    %142 = vmatpush1.msra.mxu0 %v118
    %143 = vmatprep.subr.mxu0 0.0
    %144 = vmatpush1.msra.mxu0 %v119
    %145 = vmatprep.subr.mxu0 0.0
    %146 = vmatpush1.msra.mxu0 %v120
    %147 = vmatprep.subr.mxu0 0.0
    %148 = vmatpush1.msra.mxu0 %v121
    %149 = vmatprep.subr.mxu0 0.0
    %150 = vmatpush1.msra.mxu0 %v122
    %151 = vmatprep.subr.mxu0 0.0
    %152 = vmatpush1.msra.mxu0 %v123
    %153 = vmatprep.subr.mxu0 0.0
    %154 = vmatpush1.msra.mxu0 %v124
    %155 = vmatprep.subr.mxu0 0.0
    %156 = vmatpush1.msra.mxu0 %v125
    %157 = vmatprep.subr.mxu0 0.0
    %158 = vmatpush1.msra.mxu0 %v126
    %159 = vmatprep.subr.mxu0 0.0
    %160 = vmatpush1.msra.mxu0 0.0
    %161 = vmatprep.subr.mxu0 0.0
    %162 = vmatpush1.msra.mxu0 0.0
    %163 = vmatprep.subr.mxu0 0.0
    %164 = vmatpush1.msra.mxu0 0.0
    %165 = vmatprep.subr.mxu0 0.0
    %166 = vmatpush1.msra.mxu0 0.0
    %167 = vmatprep.subr.mxu0 0.0
    %168 = vmatpush1.msra.mxu0 0.0
    %169 = vmatprep.subr.mxu0 0.0
    %170 = vmatpush1.msra.mxu0 0.0
    %171 = vmatprep.subr.mxu0 0.0
    %172 = vmatpush1.msra.mxu0 0.0
    %173 = vmatprep.subr.mxu0 0.0
    %174 = vmatpush1.msra.mxu0 0.0
    %175 = vmatprep.subr.mxu0 0.0
    %176 = vmatpush1.msra.mxu0 0.0
    %177 = vmatprep.subr.mxu0 0.0
    %178 = vmatpush1.msra.mxu0 0.0
    %179 = vmatprep.subr.mxu0 0.0
    %180 = vmatpush1.msra.mxu0 0.0
    %181 = vmatprep.subr.mxu0 0.0
    %182 = vmatpush1.msra.mxu0 0.0
    %183 = vmatprep.subr.mxu0 0.0
    %184 = vmatpush1.msra.mxu0 0.0
    %185 = vmatprep.subr.mxu0 0.0
    %186 = vmatpush1.msra.mxu0 0.0
    %187 = vmatprep.subr.mxu0 0.0
    %188 = vmatpush1.msra.mxu0 0.0
    %189 = vmatprep.subr.mxu0 0.0
    %190 = vmatpush1.msra.mxu0 0.0
    %191 = vmatprep.mubr.f32.mxu0 0.0
    %192 = vmatmul.mubr.f32.gmra.mrb[0].mxu0 %v24
    %v193 = vpop.f32.mrb[0].mxu0
    %v194 = vadd.f32 0.0, %v193
    %v195 = vpop.f32.mrb[0].mxu0
    %196 = vdwg.mxu0
    %v197 = vld [vmem:[%s2] sm:$0xff]
    %v198 = vld [vmem:[%s2 + $0x8] sm:$0xff]
    %vm199 = vcmask 130048
    %v201 = vsel %vm199, %v108, 0
    %203 = vmatprep.subr.mxu0 0.0
    %204 = vmatpush1.msra.mxu0 %v197
    %205 = vmatprep.subr.mxu0 0.0
    %206 = vmatpush1.msra.mxu0 %v198
    %207 = vmatprep.subr.mxu0 0.0
    %208 = vmatpush1.msra.mxu0 0.0
    %209 = vmatprep.subr.mxu0 0.0
    %210 = vmatpush1.msra.mxu0 0.0
    %211 = vmatprep.subr.mxu0 0.0
    %212 = vmatpush1.msra.mxu0 0.0
    %213 = vmatprep.subr.mxu0 0.0
    %214 = vmatpush1.msra.mxu0 0.0
    %215 = vmatprep.subr.mxu0 0.0
    %216 = vmatpush1.msra.mxu0 0.0
    %217 = vmatprep.subr.mxu0 0.0
    %218 = vmatpush1.msra.mxu0 0.0
    %219 = vmatprep.subr.mxu0 0.0
    %220 = vmatpush1.msra.mxu0 0.0
    %221 = vmatprep.subr.mxu0 0.0
    %222 = vmatpush1.msra.mxu0 0.0
    %223 = vmatprep.subr.mxu0 0.0
    %224 = vmatpush1.msra.mxu0 0.0
    %225 = vmatprep.subr.mxu0 0.0
    %226 = vmatpush1.msra.mxu0 0.0
    %227 = vmatprep.subr.mxu0 0.0
    %228 = vmatpush1.msra.mxu0 0.0
    %229 = vmatprep.subr.mxu0 0.0
    %230 = vmatpush1.msra.mxu0 0.0
    %231 = vmatprep.subr.mxu0 0.0
    %232 = vmatpush1.msra.mxu0 0.0
    %233 = vmatprep.subr.mxu0 0.0
    %234 = vmatpush1.msra.mxu0 0.0
    %235 = vmatprep.subr.mxu0 0.0
    %236 = vmatpush1.msra.mxu0 0.0
    %237 = vmatprep.subr.mxu0 0.0
    %238 = vmatpush1.msra.mxu0 0.0
    %239 = vmatprep.subr.mxu0 0.0
    %240 = vmatpush1.msra.mxu0 0.0
    %241 = vmatprep.subr.mxu0 0.0
    %242 = vmatpush1.msra.mxu0 0.0
    %243 = vmatprep.subr.mxu0 0.0
    %244 = vmatpush1.msra.mxu0 0.0
    %245 = vmatprep.subr.mxu0 0.0
    %246 = vmatpush1.msra.mxu0 0.0
    %247 = vmatprep.subr.mxu0 0.0
    %248 = vmatpush1.msra.mxu0 0.0
    %249 = vmatprep.subr.mxu0 0.0
    %250 = vmatpush1.msra.mxu0 0.0
    %251 = vmatprep.subr.mxu0 0.0
    %252 = vmatpush1.msra.mxu0 0.0
    %253 = vmatprep.subr.mxu0 0.0
    %254 = vmatpush1.msra.mxu0 0.0
    %255 = vmatprep.subr.mxu0 0.0
    %256 = vmatpush1.msra.mxu0 0.0
    %257 = vmatprep.subr.mxu0 0.0
    %258 = vmatpush1.msra.mxu0 0.0
    %259 = vmatprep.subr.mxu0 0.0
    %260 = vmatpush1.msra.mxu0 0.0
    %261 = vmatprep.subr.mxu0 0.0
    %262 = vmatpush1.msra.mxu0 0.0
    %263 = vmatprep.subr.mxu0 0.0
    %264 = vmatpush1.msra.mxu0 0.0
    %265 = vmatprep.subr.mxu0 0.0
    %266 = vmatpush1.msra.mxu0 0.0
    %267 = vmatprep.mubr.f32.mxu0 0.0
    %268 = vmatmul.mubr.f32.gmra.mrb[0].mxu0 %v201
    %v269 = vpop.f32.mrb[0].mxu0
    %v270 = vadd.f32 0.0, %v269
    %v271 = vpop.f32.mrb[0].mxu0
    %272 = vdwg.mxu0
    %v273 = vld [vmem:[%s4] sm:$0xff]
    %v274 = vld [vmem:[%s4 + $0x8] sm:$0xff]
    %v275 = vld [vmem:[%s4 + $0x10] sm:$0xff]
    %v276 = vld [vmem:[%s4 + $0x18] sm:$0xff]
    %vm277 = vcmask 261120
    %v279 = vsel %vm277, %v194, 0
    %281 = vmatprep.subr.mxu0 0.0
    %282 = vmatpush1.msra.mxu0 %v273
    %283 = vmatprep.subr.mxu0 0.0
    %284 = vmatpush1.msra.mxu0 %v274
    %285 = vmatprep.subr.mxu0 0.0
    %286 = vmatpush1.msra.mxu0 %v275
    %287 = vmatprep.subr.mxu0 0.0
    %288 = vmatpush1.msra.mxu0 %v276
    %289 = vmatprep.subr.mxu0 0.0
    %290 = vmatpush1.msra.mxu0 0.0
    %291 = vmatprep.subr.mxu0 0.0
    %292 = vmatpush1.msra.mxu0 0.0
    %293 = vmatprep.subr.mxu0 0.0
    %294 = vmatpush1.msra.mxu0 0.0
    %295 = vmatprep.subr.mxu0 0.0
    %296 = vmatpush1.msra.mxu0 0.0
    %297 = vmatprep.subr.mxu0 0.0
    %298 = vmatpush1.msra.mxu0 0.0
    %299 = vmatprep.subr.mxu0 0.0
    %300 = vmatpush1.msra.mxu0 0.0
    %301 = vmatprep.subr.mxu0 0.0
    %302 = vmatpush1.msra.mxu0 0.0
    %303 = vmatprep.subr.mxu0 0.0
    %304 = vmatpush1.msra.mxu0 0.0
    %305 = vmatprep.subr.mxu0 0.0
    %306 = vmatpush1.msra.mxu0 0.0
    %307 = vmatprep.subr.mxu0 0.0
    %308 = vmatpush1.msra.mxu0 0.0
    %309 = vmatprep.subr.mxu0 0.0
    %310 = vmatpush1.msra.mxu0 0.0
    %311 = vmatprep.subr.mxu0 0.0
    %312 = vmatpush1.msra.mxu0 0.0
    %313 = vmatprep.subr.mxu0 0.0
    %314 = vmatpush1.msra.mxu0 0.0
    %315 = vmatprep.subr.mxu0 0.0
    %316 = vmatpush1.msra.mxu0 0.0
    %317 = vmatprep.subr.mxu0 0.0
    %318 = vmatpush1.msra.mxu0 0.0
    %319 = vmatprep.subr.mxu0 0.0
    %320 = vmatpush1.msra.mxu0 0.0
    %321 = vmatprep.subr.mxu0 0.0
    %322 = vmatpush1.msra.mxu0 0.0
    %323 = vmatprep.subr.mxu0 0.0
    %324 = vmatpush1.msra.mxu0 0.0
    %325 = vmatprep.subr.mxu0 0.0
    %326 = vmatpush1.msra.mxu0 0.0
    %327 = vmatprep.subr.mxu0 0.0
    %328 = vmatpush1.msra.mxu0 0.0
    %329 = vmatprep.subr.mxu0 0.0
    %330 = vmatpush1.msra.mxu0 0.0
    %331 = vmatprep.subr.mxu0 0.0
    %332 = vmatpush1.msra.mxu0 0.0
    %333 = vmatprep.subr.mxu0 0.0
    %334 = vmatpush1.msra.mxu0 0.0
    %335 = vmatprep.subr.mxu0 0.0
    %336 = vmatpush1.msra.mxu0 0.0
    %337 = vmatprep.subr.mxu0 0.0
    %338 = vmatpush1.msra.mxu0 0.0
    %339 = vmatprep.subr.mxu0 0.0
    %340 = vmatpush1.msra.mxu0 0.0
    %341 = vmatprep.subr.mxu0 0.0
    %342 = vmatpush1.msra.mxu0 0.0
    %343 = vmatprep.subr.mxu0 0.0
    %344 = vmatpush1.msra.mxu0 0.0
    %345 = vmatprep.mubr.f32.mxu0 0.0
    %346 = vmatmul.mubr.f32.gmra.mrb[0].mxu0 %v279
    %v347 = vpop.f32.mrb[0].mxu0
    %v348 = vadd.f32 0.0, %v347
    %v349 = vpop.f32.mrb[0].mxu0
    %350 = vdwg.mxu0
    %v352 = vrot.slane %v270, 2
    %v355 = vrot.slane %v348, 4
    %vm357 = vcmask 1045504
    %v358 = vsel %vm357, %v24, %v352
    %vm359 = vcmask 1043456
    %v360 = vsel %vm359, %v352, %v355
    %v361 = vld [vmem:[%s5] sm:$0xff]
    %v362 = vld [vmem:[%s5 + $0x8] sm:$0xff]
    %v363 = vld [vmem:[%s5 + $0x10] sm:$0xff]
    %vm364 = vcmask 146432
    %v366 = vsel %vm364, %v361, 0
    %v369 = vsel %vm364, %v362, 0
    %v372 = vsel %vm364, %v363, 0
    %vm374 = vcmask 1041408
    %v375 = vsel %vm374, %v355, 0
    %377 = vmatprep.subr.mxu0 0.0
    %378 = vmatpush1.msra.mxu0 %v358
    %379 = vmatprep.subr.mxu0 0.0
    %380 = vmatpush1.msra.mxu0 %v360
    %381 = vmatprep.subr.mxu0 0.0
    %382 = vmatpush1.msra.mxu0 %v375
    %383 = vmatprep.subr.mxu0 0.0
    %384 = vmatpush1.msra.mxu0 0.0
    %385 = vmatprep.subr.mxu0 0.0
    %386 = vmatpush1.msra.mxu0 0.0
    %387 = vmatprep.subr.mxu0 0.0
    %388 = vmatpush1.msra.mxu0 0.0
    %389 = vmatprep.subr.mxu0 0.0
    %390 = vmatpush1.msra.mxu0 0.0
    %391 = vmatprep.subr.mxu0 0.0
    %392 = vmatpush1.msra.mxu0 0.0
    %393 = vmatprep.subr.mxu0 0.0
    %394 = vmatpush1.msra.mxu0 0.0
    %395 = vmatprep.subr.mxu0 0.0
    %396 = vmatpush1.msra.mxu0 0.0
    %397 = vmatprep.subr.mxu0 0.0
    %398 = vmatpush1.msra.mxu0 0.0
    %399 = vmatprep.subr.mxu0 0.0
    %400 = vmatpush1.msra.mxu0 0.0
    %401 = vmatprep.subr.mxu0 0.0
    %402 = vmatpush1.msra.mxu0 0.0
    %403 = vmatprep.subr.mxu0 0.0
    %404 = vmatpush1.msra.mxu0 0.0
    %405 = vmatprep.subr.mxu0 0.0
    %406 = vmatpush1.msra.mxu0 0.0
    %407 = vmatprep.subr.mxu0 0.0
    %408 = vmatpush1.msra.mxu0 0.0
    %409 = vmatprep.subr.mxu0 0.0
    %410 = vmatpush1.msra.mxu0 0.0
    %411 = vmatprep.subr.mxu0 0.0
    %412 = vmatpush1.msra.mxu0 0.0
    %413 = vmatprep.subr.mxu0 0.0
    %414 = vmatpush1.msra.mxu0 0.0
    %415 = vmatprep.subr.mxu0 0.0
    %416 = vmatpush1.msra.mxu0 0.0
    %417 = vmatprep.subr.mxu0 0.0
    %418 = vmatpush1.msra.mxu0 0.0
    %419 = vmatprep.subr.mxu0 0.0
    %420 = vmatpush1.msra.mxu0 0.0
    %421 = vmatprep.subr.mxu0 0.0
    %422 = vmatpush1.msra.mxu0 0.0
    %423 = vmatprep.subr.mxu0 0.0
    %424 = vmatpush1.msra.mxu0 0.0
    %425 = vmatprep.subr.mxu0 0.0
    %426 = vmatpush1.msra.mxu0 0.0
    %427 = vmatprep.subr.mxu0 0.0
    %428 = vmatpush1.msra.mxu0 0.0
    %429 = vmatprep.subr.mxu0 0.0
    %430 = vmatpush1.msra.mxu0 0.0
    %431 = vmatprep.subr.mxu0 0.0
    %432 = vmatpush1.msra.mxu0 0.0
    %433 = vmatprep.subr.mxu0 0.0
    %434 = vmatpush1.msra.mxu0 0.0
    %435 = vmatprep.subr.mxu0 0.0
    %436 = vmatpush1.msra.mxu0 0.0
    %437 = vmatprep.subr.mxu0 0.0
    %438 = vmatpush1.msra.mxu0 0.0
    %439 = vmatprep.subr.mxu0 0.0
    %440 = vmatpush1.msra.mxu0 0.0
    %441 = vmatprep.mubr.f32.mxu0 0.0
    %442 = vmatmul.mubr.f32.gmra.mrb[0].mxu0 %v366
    %v443 = vpop.f32.mrb[0].mxu0
    %v444 = vadd.f32 0.0, %v443
    %v445 = vpop.f32.mrb[0].mxu0
    %446 = vmatprep.mubr.f32.mxu0 0.0
    %447 = vmatmul.mubr.f32.gmra.mrb[0].mxu0 %v369
    %v448 = vpop.f32.mrb[0].mxu0
    %v449 = vadd.f32 0.0, %v448
    %v450 = vpop.f32.mrb[0].mxu0
    %451 = vmatprep.mubr.f32.mxu0 0.0
    %452 = vmatmul.mubr.f32.gmra.mrb[0].mxu0 %v372
    %v453 = vpop.f32.mrb[0].mxu0
    %v454 = vadd.f32 0.0, %v453
    %v455 = vpop.f32.mrb[0].mxu0
    %456 = vdwg.mxu0
    %v457 = vmax.f32 %v444, 0.0
    %v458 = vmax.f32 %v449, 0.0
    %v459 = vmax.f32 %v454, 0.0
    %460 = vst [vmem:[#allocation2] sm:$0xff] %v457
    %461 = vst [vmem:[#allocation2 + $0x8] sm:$0xff] %v458
    %462 = vst [vmem:[#allocation2 + $0x10] sm:$0xff] %v459
    %v463 = vld [vmem:[#allocation2] sm:$0xff]
    %464 = vadd.xlane.f32.xlu0 %v463
    %v465 = vpop.xlane.xlu0 %464
    %v466 = vadd.f32 %v465, 0.0
    %v467 = vld [vmem:[#allocation2 + $0x8] sm:$0xff]
    %468 = vadd.xlane.f32.xlu0 %v467
    %v469 = vpop.xlane.xlu0 %468
    %v470 = vadd.f32 %v466, %v469
    %v471 = vld [vmem:[#allocation2 + $0x10] sm:$0xff]
    %472 = vadd.xlane.f32.xlu0 %v471
    %v473 = vpop.xlane.xlu0 %472
    %v474 = vadd.f32 %v470, %v473
    %v475 = vrcp.pop 384.0
    %v476 = vmul.f32 %v474, %v475
    %v477 = vsub.f32 %v463, %v476
    %v478 = vmul.f32 %v477, %v477
    %479 = vadd.xlane.f32.xlu0 %v478
    %v480 = vpop.xlane.xlu0 %479
    %v481 = vadd.f32 %v480, 0.0
    %v482 = vsub.f32 %v467, %v476
    %v483 = vmul.f32 %v482, %v482
    %484 = vadd.xlane.f32.xlu0 %v483
    %v485 = vpop.xlane.xlu0 %484
    %v486 = vadd.f32 %v481, %v485
    %v487 = vsub.f32 %v471, %v476
    %v488 = vmul.f32 %v487, %v487
    %489 = vadd.xlane.f32.xlu0 %v488
    %v490 = vpop.xlane.xlu0 %489
    %v491 = vadd.f32 %v486, %v490
    %v492 = vmul.f32 %v491, %v475
    %v493 = vadd.f32 %v492, 1e-05
    %v494 = vrsqrt.pop %v493
    %v495 = vmul.f32 %v477, %v494
    %496 = vst [vmem:[#allocation2] sm:$0xff] %v495
    %v497 = vld [vmem:[#allocation2 + $0x8] sm:$0xff]
    %v498 = vsub.f32 %v497, %v476
    %v499 = vmul.f32 %v498, %v494
    %500 = vst [vmem:[#allocation2 + $0x8] sm:$0xff] %v499
    %v501 = vld [vmem:[#allocation2 + $0x10] sm:$0xff]
    %v502 = vsub.f32 %v501, %v476
    %v503 = vmul.f32 %v502, %v494
    %504 = vst [vmem:[#allocation2 + $0x10] sm:$0xff] %v503
    // Predicated region
    $region26: #{tpu_custom_call.1} parent=1 // pred_check
      _
    $region27: #{tpu_custom_call.1} parent=1 // pred_check_branch
      %506 = sbr.rel (0) target = $region29
    $region28: #{tpu_custom_call.1} parent=1 // pred_region
      %s508 = ssub.s32 384, 384
      %509 = vsyncadd [#allocation3], %s508
      %s510 = sshll.u32 [#allocation2], 4
      %s511 = int_to_ptr.vmem [resolvable:$true] %s510
      %516 = dma.vmem_to_hbm [thread:$0]  %s511, 384, %s6, [#allocation3], 128, 128, 8
    $region29: #{tpu_custom_call.1} parent=1 // pred_fallthru
      _
    // Predicated region
    $region30: #{tpu_custom_call.1} parent=1 // pred_check
      _
    $region31: #{tpu_custom_call.1} parent=1 // pred_check_branch
      %518 = sbr.rel (0) target = $region33
    $region32: #{tpu_custom_call.1} parent=1 // pred_region
      %519 = dma.done [#allocation3], 384
    $region33: #{tpu_custom_call.1} parent=1 // pred_fallthru
      _
    %520 = vsyncpa [#allocation3], 1

</llo_original>
